<compile_context>
chip_gen: v5e
topology: v5e:2x2
jax: 0.10.0
libtpu: 0.0.40
codegen_flags: <defaults>
</compile_context>

<pallas_src>
import jax
import jax.numpy as jnp
from jax.experimental import pallas as pl
from jax.experimental.pallas import tpu as pltpu


def _round_up(x, m):
    return ((x + m - 1) // m) * m


def actor_kernel(flat_ref, depth_ref, reward_ref,
                 w1s_ref, w1d_ref, w1r_ref, b1_ref,
                 w2_ref, b2_ref,
                 w3_ref, b3_ref,
                 w4_ref, b4_ref,
                 out_ref):
    flat = flat_ref[...]        # (bt, S)   bf16
    depth = depth_ref[...]      # (bt, 1)   f32
    reward = reward_ref[...]    # (bt, 1)   f32

    # ---- Layer 1: fused "concat" -- state part on the MXU, scalar features on the VPU ----
    h1 = jnp.dot(flat, w1s_ref[...], preferred_element_type=jnp.float32)
    h1 = h1 + depth * w1d_ref[...] + reward * w1r_ref[...] + b1_ref[...]
    h1 = jnp.maximum(h1, 0.0)

    # ---- Layer 2 ----
    h2 = jnp.dot(h1.astype(jnp.bfloat16), w2_ref[...],
                 preferred_element_type=jnp.float32) + b2_ref[...]
    h2 = jnp.maximum(h2, 0.0)

    # ---- Layer 3 (output lanes padded 64 -> 128 with zeros) ----
    h3 = jnp.dot(h2.astype(jnp.bfloat16), w3_ref[...],
                 preferred_element_type=jnp.float32) + b3_ref[...]
    h3 = jnp.maximum(h3, 0.0)

    # ---- Layer 4 (action lanes padded to 128; padded lanes get bias -1e30) ----
    logits = jnp.dot(h3.astype(jnp.bfloat16), w4_ref[...],
                     preferred_element_type=jnp.float32) + b4_ref[...]

    # numerically-stable softmax over the padded action axis; padded lanes:
    # exp(-1e30 - m) underflows to exactly 0 -> zero mass in the denominator.
    m = jnp.max(logits, axis=-1, keepdims=True)
    e = jnp.exp(logits - m)
    denom = jnp.sum(e, axis=-1, keepdims=True)
    probs = e / denom                       # exact normalization (rows sum to 1)

    # store only the real action lanes (narrow masked store; no padded HBM writeback)
    na = out_ref.shape[-1]
    out_ref[...] = probs[:, :na].astype(out_ref.dtype)


def _pick_batch_tile(batch):
    if batch <= 16:
        return batch                        # single resident block: latency path
    # >=2 grid steps so both v7x TensorCores get work; cap at 512 rows/step so
    # per-step pipeline overhead is amortized without oversizing the last partial tile.
    return min(_round_up(pl.cdiv(batch, 2), 8), 512)


def actor_forward(circuit_state, circuit_depth, reward, params, num_actions):
    """Pallas-backed forward pass of the Actor network.

    circuit_state: (B, 2^num_qubits, 2)  (bf16 preferred; any float accepted)
    circuit_depth: (B, 1) float
    reward:        (B, 1) float
    returns action_probs: (B, num_actions) float32
    """
    batch = circuit_state.shape[0]
    # contiguous flatten only -- depth/reward columns are folded into the first Linear
    # inside the kernel, so no concatenated `x` is ever materialized in HBM.
    flat = circuit_state.reshape(batch, -1).astype(jnp.bfloat16)
    depth = circuit_depth.astype(jnp.float32)
    rew = reward.astype(jnp.float32)

    (w1s, w1d, w1r, b1), (w2, b2), (w3, b3), (w4, b4) = params
    state_dim = w1s.shape[0]
    d1, d2 = w2.shape                 # 256, 128
    d3_pad = w3.shape[1]              # 128 (padded hidden)
    a_pad = w4.shape[1]               # 128 (padded actions)

    bt = _pick_batch_tile(batch)
    grid = (pl.cdiv(batch, bt),)

    def act_spec(feat):
        return pl.BlockSpec((bt, feat), lambda i: (i, 0))

    def const_spec(arr):
        # constant index_map => block stays VMEM-resident across the batch grid
        return pl.BlockSpec(arr.shape, lambda i: (0, 0))

    in_specs = [
        act_spec(state_dim),            # flat (bf16)
        act_spec(1),                    # depth
        act_spec(1),                    # reward
        const_spec(w1s), const_spec(w1d), const_spec(w1r), const_spec(b1),
        const_spec(w2), const_spec(b2),
        const_spec(w3), const_spec(b3),
        const_spec(w4), const_spec(b4),
    ]
    out_spec = pl.BlockSpec((bt, num_actions), lambda i: (i, 0))

    flops = int(2 * batch * (state_dim * d1 + d1 * d2 + d2 * d3_pad + d3_pad * a_pad))
    weight_bytes = int(sum(int(a.size) * a.dtype.itemsize
                           for a in (w1s, w1d, w1r, b1, w2, b2, w3, b3, w4, b4)))
    act_bytes = int(flat.size * 2 + depth.size * 4 + rew.size * 4
                    + batch * num_actions * 4)
    cost = pl.CostEstimate(flops=flops,
                           transcendentals=int(batch * a_pad),
                           bytes_accessed=weight_bytes + act_bytes)

    probs = pl.pallas_call(
        actor_kernel,
        out_shape=jax.ShapeDtypeStruct((batch, num_actions), jnp.float32),
        grid=grid,
        in_specs=in_specs,
        out_specs=out_spec,
        compiler_params=pltpu.CompilerParams(dimension_semantics=("parallel",)),
        cost_estimate=cost,
    )(flat, depth, rew, w1s, w1d, w1r, b1, w2, b2, w3, b3, w4, b4)

    return probs


def orthogonal_init(key, rows, cols, gain):
    """Deterministic orthogonal init (same semantics as nn.init.orthogonal_)."""
    flat = jax.random.normal(key, (max(rows, cols), min(rows, cols)), dtype=jnp.float32)
    q, r = jnp.linalg.qr(flat)
    d = jnp.diagonal(r)
    q = q * jnp.where(d >= 0, 1.0, -1.0)       # sign fix without sign(0)=0 hazard
    if rows < cols:
        q = q.T
    return (gain * q[:rows, :cols]).astype(jnp.float32)


def make_actor_params(key, num_qubits, num_actions):
    state_size = 2 ** num_qubits * 2
    gain = 1.414                      # matches the hard-coded gain in the PyTorch spec
    d_in, d1, d2, d3 = state_size + 2, 256, 128, 64
    d3_pad = _round_up(d3, 128)
    a_pad = _round_up(num_actions, 128)

    k1, k2, k3, k4 = jax.random.split(key, 4)

    # Layer 1: orthogonal over the logical (state_size+2, 256), then split rows:
    #   rows [:S] -> MXU matmul weight (bf16); row S -> depth, row S+1 -> reward (VPU, f32)
    w1 = orthogonal_init(k1, d_in, d1, gain)
    w1s = w1[:state_size].astype(jnp.bfloat16)                   # (S, 256)
    w1d = w1[state_size:state_size + 1]                          # (1, 256) f32
    w1r = w1[state_size + 1:state_size + 2]                      # (1, 256) f32
    b1 = jnp.zeros((1, d1), jnp.float32)

    w2 = orthogonal_init(k2, d1, d2, gain).astype(jnp.bfloat16)  # (256, 128)
    b2 = jnp.zeros((1, d2), jnp.float32)

    # Layer 3: logical (128, 64) zero-padded to (128, 128) for lane-dense MXU/VPU work
    w3 = jnp.zeros((d2, d3_pad), jnp.float32)
    w3 = w3.at[:, :d3].set(orthogonal_init(k3, d2, d3, gain)).astype(jnp.bfloat16)
    b3 = jnp.zeros((1, d3_pad), jnp.float32)

    # Layer 4: logical (64, A) zero-padded to (128, 128); padded logit lanes get -1e30 bias
    w4 = jnp.zeros((d3_pad, a_pad), jnp.float32)
    w4 = w4.at[:d3, :num_actions].set(orthogonal_init(k4, d3, num_actions, gain))
    w4 = w4.astype(jnp.bfloat16)
    b4 = jnp.full((1, a_pad), -1e30, jnp.float32).at[:, :num_actions].set(0.0)

    return ((w1s, w1d, w1r, b1), (w2, b2), (w3, b3), (w4, b4))


if __name__ == "__main__":
    num_qubits = 4          # state_size = 2^4 * 2 = 32, logical input dim = 34
    num_actions = 8

    key = jax.random.PRNGKey(0)
    k_params, k_state, k_depth, k_reward = jax.random.split(key, 4)
    params = make_actor_params(k_params, num_qubits, num_actions)

    # --- small batch: single-block latency path ---
    batch = 2
    circuit_state = jax.random.normal(
        k_state, (batch, 2 ** num_qubits, 2), dtype=jnp.float32).astype(jnp.bfloat16)
    circuit_depth = jax.random.uniform(k_depth, (batch, 1), dtype=jnp.float32)
    reward = jax.random.normal(k_reward, (batch, 1), dtype=jnp.float32)

    action_probs = actor_forward(circuit_state, circuit_depth, reward, params, num_actions)
    action_probs = jax.block_until_ready(action_probs)

    assert action_probs.shape == (batch, num_actions)
    assert bool(jnp.all(action_probs >= 0.0))
    assert jnp.allclose(jnp.sum(action_probs, axis=-1), 1.0, atol=1e-3)

    # --- mid-size batch: exercises the 2-step parallel grid and the masked partial tile ---
    batch2 = 40
    ks2, kd2, kr2 = jax.random.split(jax.random.PRNGKey(1), 3)
    cs2 = jax.random.normal(ks2, (batch2, 2 ** num_qubits, 2),
                            dtype=jnp.float32).astype(jnp.bfloat16)
    cd2 = jax.random.uniform(kd2, (batch2, 1), dtype=jnp.float32)
    rw2 = jax.random.normal(kr2, (batch2, 1), dtype=jnp.float32)

    probs2 = actor_forward(cs2, cd2, rw2, params, num_actions)
    probs2 = jax.block_until_ready(probs2)

    assert probs2.shape == (batch2, num_actions)
    assert bool(jnp.all(probs2 >= 0.0))
    assert jnp.allclose(jnp.sum(probs2, axis=-1), 1.0, atol=1e-3)

    print("KERNEL_OK")
</pallas_src>

<mosaic_0001>
module attributes {stable_mosaic.version = 11 : i64} {
  func.func @actor_kernel(%arg0: i32, %arg1: memref<2x32xbf16, #tpu.memory_space<vmem>>, %arg2: memref<2x1xf32, #tpu.memory_space<vmem>>, %arg3: memref<2x1xf32, #tpu.memory_space<vmem>>, %arg4: memref<32x256xbf16, #tpu.memory_space<vmem>>, %arg5: memref<1x256xf32, #tpu.memory_space<vmem>>, %arg6: memref<1x256xf32, #tpu.memory_space<vmem>>, %arg7: memref<1x256xf32, #tpu.memory_space<vmem>>, %arg8: memref<256x128xbf16, #tpu.memory_space<vmem>>, %arg9: memref<1x128xf32, #tpu.memory_space<vmem>>, %arg10: memref<128x128xbf16, #tpu.memory_space<vmem>>, %arg11: memref<1x128xf32, #tpu.memory_space<vmem>>, %arg12: memref<128x128xbf16, #tpu.memory_space<vmem>>, %arg13: memref<1x128xf32, #tpu.memory_space<vmem>>, %arg14: memref<2x8xf32, #tpu.memory_space<vmem>>) attributes {dimension_semantics = [#tpu.dimension_semantics<parallel>], iteration_bounds = array<i64: 1>, scalar_prefetch = 0 : i64, scratch_operands = 0 : i64, tpu.core_type = #tpu.core_type<tc>, window_params = [{transform_indices = @transform_0, window_bounds = array<i64: 2, 32>}, {transform_indices = @transform_1, window_bounds = array<i64: 2, 1>}, {transform_indices = @transform_2, window_bounds = array<i64: 2, 1>}, {pipeline_mode = #tpu.pipeline_mode<synchronous>, transform_indices = @transform_3, window_bounds = array<i64: 32, 256>}, {pipeline_mode = #tpu.pipeline_mode<synchronous>, transform_indices = @transform_4, window_bounds = array<i64: 1, 256>}, {pipeline_mode = #tpu.pipeline_mode<synchronous>, transform_indices = @transform_5, window_bounds = array<i64: 1, 256>}, {pipeline_mode = #tpu.pipeline_mode<synchronous>, transform_indices = @transform_6, window_bounds = array<i64: 1, 256>}, {pipeline_mode = #tpu.pipeline_mode<synchronous>, transform_indices = @transform_7, window_bounds = array<i64: 256, 128>}, {pipeline_mode = #tpu.pipeline_mode<synchronous>, transform_indices = @transform_8, window_bounds = array<i64: 1, 128>}, {pipeline_mode = #tpu.pipeline_mode<synchronous>, transform_indices = @transform_9, window_bounds = array<i64: 128, 128>}, {pipeline_mode = #tpu.pipeline_mode<synchronous>, transform_indices = @transform_10, window_bounds = array<i64: 1, 128>}, {pipeline_mode = #tpu.pipeline_mode<synchronous>, transform_indices = @transform_11, window_bounds = array<i64: 128, 128>}, {pipeline_mode = #tpu.pipeline_mode<synchronous>, transform_indices = @transform_12, window_bounds = array<i64: 1, 128>}, {transform_indices = @transform_13, window_bounds = array<i64: 2, 8>}]} {
    %c0 = arith.constant 0 : index
    %c0_0 = arith.constant 0 : index
    %0 = vector.load %arg1[%c0, %c0_0] : memref<2x32xbf16, #tpu.memory_space<vmem>>, vector<2x32xbf16>
    %c0_1 = arith.constant 0 : index
    %c0_2 = arith.constant 0 : index
    %1 = vector.load %arg2[%c0_1, %c0_2] : memref<2x1xf32, #tpu.memory_space<vmem>>, vector<2x1xf32>
    %c0_3 = arith.constant 0 : index
    %c0_4 = arith.constant 0 : index
    %2 = vector.load %arg3[%c0_3, %c0_4] : memref<2x1xf32, #tpu.memory_space<vmem>>, vector<2x1xf32>
    %c0_5 = arith.constant 0 : index
    %c0_6 = arith.constant 0 : index
    %3 = vector.load %arg4[%c0_5, %c0_6] : memref<32x256xbf16, #tpu.memory_space<vmem>>, vector<32x256xbf16>
    %cst = arith.constant dense<0.000000e+00> : vector<2x256xf32>
    %4 = tpu.matmul %0, %3, %cst {dimension_numbers = #tpu.dot_dimension_numbers<[1], [0], [0], [1], [0, 0, 1, 1], [], []>} : vector<2x32xbf16>, vector<32x256xbf16>, vector<2x256xf32> -> vector<2x256xf32>
    %c0_7 = arith.constant 0 : index
    %c0_8 = arith.constant 0 : index
    %5 = vector.load %arg5[%c0_7, %c0_8] : memref<1x256xf32, #tpu.memory_space<vmem>>, vector<1x256xf32>
    %6 = vector.broadcast %1 : vector<2x1xf32> to vector<2x256xf32>
    %7 = vector.broadcast %5 : vector<1x256xf32> to vector<2x256xf32>
    %8 = arith.mulf %6, %7 : vector<2x256xf32>
    %9 = arith.addf %4, %8 : vector<2x256xf32>
    %c0_9 = arith.constant 0 : index
    %c0_10 = arith.constant 0 : index
    %10 = vector.load %arg6[%c0_9, %c0_10] : memref<1x256xf32, #tpu.memory_space<vmem>>, vector<1x256xf32>
    %11 = vector.broadcast %2 : vector<2x1xf32> to vector<2x256xf32>
    %12 = vector.broadcast %10 : vector<1x256xf32> to vector<2x256xf32>
    %13 = arith.mulf %11, %12 : vector<2x256xf32>
    %14 = arith.addf %9, %13 : vector<2x256xf32>
    %c0_11 = arith.constant 0 : index
    %c0_12 = arith.constant 0 : index
    %15 = vector.load %arg7[%c0_11, %c0_12] : memref<1x256xf32, #tpu.memory_space<vmem>>, vector<1x256xf32>
    %16 = vector.broadcast %15 : vector<1x256xf32> to vector<2x256xf32>
    %17 = arith.addf %14, %16 : vector<2x256xf32>
    %cst_13 = arith.constant 0.000000e+00 : f32
    %18 = vector.broadcast %cst_13 : f32 to vector<2x256xf32>
    %19 = arith.maximumf %17, %18 : vector<2x256xf32>
    %20 = arith.truncf %19 : vector<2x256xf32> to vector<2x256xbf16>
    %c0_14 = arith.constant 0 : index
    %c0_15 = arith.constant 0 : index
    %21 = vector.load %arg8[%c0_14, %c0_15] : memref<256x128xbf16, #tpu.memory_space<vmem>>, vector<256x128xbf16>
    %cst_16 = arith.constant dense<0.000000e+00> : vector<2x128xf32>
    %22 = tpu.matmul %20, %21, %cst_16 {dimension_numbers = #tpu.dot_dimension_numbers<[1], [0], [0], [1], [0, 0, 1, 1], [], []>} : vector<2x256xbf16>, vector<256x128xbf16>, vector<2x128xf32> -> vector<2x128xf32>
    %c0_17 = arith.constant 0 : index
    %c0_18 = arith.constant 0 : index
    %23 = vector.load %arg9[%c0_17, %c0_18] : memref<1x128xf32, #tpu.memory_space<vmem>>, vector<1x128xf32>
    %24 = vector.broadcast %23 : vector<1x128xf32> to vector<2x128xf32>
    %25 = arith.addf %22, %24 : vector<2x128xf32>
    %cst_19 = arith.constant 0.000000e+00 : f32
    %26 = vector.broadcast %cst_19 : f32 to vector<2x128xf32>
    %27 = arith.maximumf %25, %26 : vector<2x128xf32>
    %28 = arith.truncf %27 : vector<2x128xf32> to vector<2x128xbf16>
    %c0_20 = arith.constant 0 : index
    %c0_21 = arith.constant 0 : index
    %29 = vector.load %arg10[%c0_20, %c0_21] : memref<128x128xbf16, #tpu.memory_space<vmem>>, vector<128x128xbf16>
    %cst_22 = arith.constant dense<0.000000e+00> : vector<2x128xf32>
    %30 = tpu.matmul %28, %29, %cst_22 {dimension_numbers = #tpu.dot_dimension_numbers<[1], [0], [0], [1], [0, 0, 1, 1], [], []>} : vector<2x128xbf16>, vector<128x128xbf16>, vector<2x128xf32> -> vector<2x128xf32>
    %c0_23 = arith.constant 0 : index
    %c0_24 = arith.constant 0 : index
    %31 = vector.load %arg11[%c0_23, %c0_24] : memref<1x128xf32, #tpu.memory_space<vmem>>, vector<1x128xf32>
    %32 = vector.broadcast %31 : vector<1x128xf32> to vector<2x128xf32>
    %33 = arith.addf %30, %32 : vector<2x128xf32>
    %cst_25 = arith.constant 0.000000e+00 : f32
    %34 = vector.broadcast %cst_25 : f32 to vector<2x128xf32>
    %35 = arith.maximumf %33, %34 : vector<2x128xf32>
    %36 = arith.truncf %35 : vector<2x128xf32> to vector<2x128xbf16>
    %c0_26 = arith.constant 0 : index
    %c0_27 = arith.constant 0 : index
    %37 = vector.load %arg12[%c0_26, %c0_27] : memref<128x128xbf16, #tpu.memory_space<vmem>>, vector<128x128xbf16>
    %cst_28 = arith.constant dense<0.000000e+00> : vector<2x128xf32>
    %38 = tpu.matmul %36, %37, %cst_28 {dimension_numbers = #tpu.dot_dimension_numbers<[1], [0], [0], [1], [0, 0, 1, 1], [], []>} : vector<2x128xbf16>, vector<128x128xbf16>, vector<2x128xf32> -> vector<2x128xf32>
    %c0_29 = arith.constant 0 : index
    %c0_30 = arith.constant 0 : index
    %39 = vector.load %arg13[%c0_29, %c0_30] : memref<1x128xf32, #tpu.memory_space<vmem>>, vector<1x128xf32>
    %40 = vector.broadcast %39 : vector<1x128xf32> to vector<2x128xf32>
    %41 = arith.addf %38, %40 : vector<2x128xf32>
    %cst_31 = arith.constant dense<0xFF800000> : vector<2xf32>
    %42 = vector.multi_reduction <maximumf>, %41, %cst_31 [1] : vector<2x128xf32> to vector<2xf32>
    %43 = vector.shape_cast %42 : vector<2xf32> to vector<2x1xf32>
    %44 = vector.broadcast %43 : vector<2x1xf32> to vector<2x128xf32>
    %45 = arith.subf %41, %44 : vector<2x128xf32>
    %46 = math.exp %45 : vector<2x128xf32>
    %cst_32 = arith.constant dense<0.000000e+00> : vector<2xf32>
    %47 = vector.multi_reduction <add>, %46, %cst_32 [1] : vector<2x128xf32> to vector<2xf32>
    %48 = vector.shape_cast %47 : vector<2xf32> to vector<2x1xf32>
    %49 = vector.broadcast %48 : vector<2x1xf32> to vector<2x128xf32>
    %50 = arith.divf %46, %49 : vector<2x128xf32>
    %51 = vector.extract_strided_slice %50 {offsets = [0, 0], sizes = [2, 8], strides = [1, 1]} : vector<2x128xf32> to vector<2x8xf32>
    %c0_33 = arith.constant 0 : index
    %c0_34 = arith.constant 0 : index
    %52 = vector.load %arg14[%c0_33, %c0_34] : memref<2x8xf32, #tpu.memory_space<vmem>>, vector<2x8xf32>
    tpu.vector_store %arg14[%c0_33, %c0_34], %51 {strides = array<i32>} : memref<2x8xf32, #tpu.memory_space<vmem>>, vector<2x8xf32>,
    return
  }
  func.func @transform_0(%arg0: i32) -> (i32, i32) {
    %c0_i32 = arith.constant 0 : i32
    %c0_i32_0 = arith.constant 0 : i32
    return %arg0, %c0_i32 : i32, i32
  }
  func.func @transform_1(%arg0: i32) -> (i32, i32) {
    %c0_i32 = arith.constant 0 : i32
    %c0_i32_0 = arith.constant 0 : i32
    return %arg0, %c0_i32 : i32, i32
  }
  func.func @transform_2(%arg0: i32) -> (i32, i32) {
    %c0_i32 = arith.constant 0 : i32
    %c0_i32_0 = arith.constant 0 : i32
    return %arg0, %c0_i32 : i32, i32
  }
  func.func @transform_3(%arg0: i32) -> (i32, i32) {
    %c0_i32 = arith.constant 0 : i32
    %c0_i32_0 = arith.constant 0 : i32
    %c0_i32_1 = arith.constant 0 : i32
    return %c0_i32, %c0_i32_0 : i32, i32
  }
  func.func @transform_4(%arg0: i32) -> (i32, i32) {
    %c0_i32 = arith.constant 0 : i32
    %c0_i32_0 = arith.constant 0 : i32
    %c0_i32_1 = arith.constant 0 : i32
    return %c0_i32, %c0_i32_0 : i32, i32
  }
  func.func @transform_5(%arg0: i32) -> (i32, i32) {
    %c0_i32 = arith.constant 0 : i32
    %c0_i32_0 = arith.constant 0 : i32
    %c0_i32_1 = arith.constant 0 : i32
    return %c0_i32, %c0_i32_0 : i32, i32
  }
  func.func @transform_6(%arg0: i32) -> (i32, i32) {
    %c0_i32 = arith.constant 0 : i32
    %c0_i32_0 = arith.constant 0 : i32
    %c0_i32_1 = arith.constant 0 : i32
    return %c0_i32, %c0_i32_0 : i32, i32
  }
  func.func @transform_7(%arg0: i32) -> (i32, i32) {
    %c0_i32 = arith.constant 0 : i32
    %c0_i32_0 = arith.constant 0 : i32
    %c0_i32_1 = arith.constant 0 : i32
    return %c0_i32, %c0_i32_0 : i32, i32
  }
  func.func @transform_8(%arg0: i32) -> (i32, i32) {
    %c0_i32 = arith.constant 0 : i32
    %c0_i32_0 = arith.constant 0 : i32
    %c0_i32_1 = arith.constant 0 : i32
    return %c0_i32, %c0_i32_0 : i32, i32
  }
  func.func @transform_9(%arg0: i32) -> (i32, i32) {
    %c0_i32 = arith.constant 0 : i32
    %c0_i32_0 = arith.constant 0 : i32
    %c0_i32_1 = arith.constant 0 : i32
    return %c0_i32, %c0_i32_0 : i32, i32
  }
  func.func @transform_10(%arg0: i32) -> (i32, i32) {
    %c0_i32 = arith.constant 0 : i32
    %c0_i32_0 = arith.constant 0 : i32
    %c0_i32_1 = arith.constant 0 : i32
    return %c0_i32, %c0_i32_0 : i32, i32
  }
  func.func @transform_11(%arg0: i32) -> (i32, i32) {
    %c0_i32 = arith.constant 0 : i32
    %c0_i32_0 = arith.constant 0 : i32
    %c0_i32_1 = arith.constant 0 : i32
    return %c0_i32, %c0_i32_0 : i32, i32
  }
  func.func @transform_12(%arg0: i32) -> (i32, i32) {
    %c0_i32 = arith.constant 0 : i32
    %c0_i32_0 = arith.constant 0 : i32
    %c0_i32_1 = arith.constant 0 : i32
    return %c0_i32, %c0_i32_0 : i32, i32
  }
  func.func @transform_13(%arg0: i32) -> (i32, i32) {
    %c0_i32 = arith.constant 0 : i32
    %c0_i32_0 = arith.constant 0 : i32
    return %arg0, %c0_i32 : i32, i32
  }
}

</mosaic_0001>

<llo_original>
// kernel: tpu_custom_call.1
$region0: #{tpu_custom_call.1}
  #allocation0 [shape = 'u32[]', space=smem, size = 0x4, offset = 0x4, fixed_abs, tag = 'smem constant byte address 0x4 - core index']
  #allocation1 [shape = 'u32[72,128]{1,0:T(1,128)}', space=vmem, size = 0x9000, scoped, tag = 'internal scratch']
  %s0 = inlined_call_operand.hbm [shape: bf16[2,32], index: 0, kind: input, shape index: {}]
  %s1 = inlined_call_operand.vmem [shape: f32[2,1], index: 1, kind: input, shape index: {}]
  %s2 = inlined_call_operand.vmem [shape: f32[2,1], index: 2, kind: input, shape index: {}]
  %s3 = inlined_call_operand.hbm [shape: bf16[32,256], index: 3, kind: input, shape index: {}]
  %s4 = inlined_call_operand.vmem [shape: f32[1,256], index: 4, kind: input, shape index: {}]
  %s5 = inlined_call_operand.vmem [shape: f32[1,256], index: 5, kind: input, shape index: {}]
  %s6 = inlined_call_operand.vmem [shape: f32[1,256], index: 6, kind: input, shape index: {}]
  %s7 = inlined_call_operand.hbm [shape: bf16[256,128], index: 7, kind: input, shape index: {}]
  %s8 = inlined_call_operand.vmem [shape: f32[1,128], index: 8, kind: input, shape index: {}]
  %s9 = inlined_call_operand.hbm [shape: bf16[128,128], index: 9, kind: input, shape index: {}]
  %s10 = inlined_call_operand.vmem [shape: f32[1,128], index: 10, kind: input, shape index: {}]
  %s11 = inlined_call_operand.hbm [shape: bf16[128,128], index: 11, kind: input, shape index: {}]
  %s12 = inlined_call_operand.vmem [shape: f32[1,128], index: 12, kind: input, shape index: {}]
  %s13 = inlined_call_operand.hbm [shape: f32[2,8], index: 13, kind: output, shape index: {}]
  %s14 = sld [smem:[#allocation0]]
  $region82: #{tpu_custom_call.1} parent=0
    _
  %s16 = ssub.s32 1, %s14
  %s17 = scalar_select 0, %s16, %s14
  $region1: #{tpu_custom_call.1} parent=0
    #allocation2 [shape = 'u8[512]{0}', space=vmem, size = 0x400, scoped, tag = 'input window, operand 0, single buffered']
    #allocation3 [shape = 's32[1]{0}', space=sflag, size = 0x4, scoped, tag = 'scoped memory for tpu_custom_call.1']
    #allocation4 [shape = 's32[1]{0}', space=sflag, size = 0x4, scoped, tag = 'scoped memory for tpu_custom_call.1']
    #allocation5 [shape = 'u8[16384]{0}', space=vmem, size = 0x4000, scoped, tag = 'input window, operand 3, single buffered']
    #allocation6 [shape = 's32[1]{0}', space=sflag, size = 0x4, scoped, tag = 'scoped memory for tpu_custom_call.1']
    #allocation7 [shape = 'u8[65536]{0}', space=vmem, size = 0x10000, scoped, tag = 'input window, operand 7, single buffered']
    #allocation8 [shape = 'u8[32768]{0}', space=vmem, size = 0x8000, scoped, tag = 'input window, operand 9, single buffered']
    #allocation9 [shape = 's32[1]{0}', space=sflag, size = 0x4, scoped, tag = 'scoped memory for tpu_custom_call.1']
    #allocation10 [shape = 'u8[32768]{0}', space=vmem, size = 0x8000, scoped, tag = 'input window, operand 11, single buffered']
    #allocation11 [shape = 'u8[1024]{0}', space=vmem, size = 0x400, scoped, tag = 'output window, operand 0, single buffered']
    %18 = vsyncpa [#allocation3], 0
    %19 = vsyncpa [#allocation6], 0
    %20 = vsyncpa [#allocation9], 0
    %21 = vsyncpa [#allocation4], 0
    // Predicated region
    $region2: #{tpu_custom_call.1} parent=1 // pred_check
      _
    $region3: #{tpu_custom_call.1} parent=1 // pred_check_branch
      %23 = sbr.rel (0) target = $region5
    $region4: #{tpu_custom_call.1} parent=1 // pred_region
      %25 = vsyncadd [#allocation3], 0
      %s27 = sshll.u32 %s0, 4
      %s28 = int_to_ptr.hbm [resolvable:$true] %s27
      %s29 = sshll.u32 [#allocation2], 4
      %s30 = int_to_ptr.vmem [resolvable:$true] %s29
      %32 = dma.hbm_to_vmem [thread:$0]  %s28, 16, %s30, [#allocation3]
    $region5: #{tpu_custom_call.1} parent=1 // pred_fallthru
      _
    // Predicated region
    $region6: #{tpu_custom_call.1} parent=1 // pred_check
      _
    $region7: #{tpu_custom_call.1} parent=1 // pred_check_branch
      %34 = sbr.rel (0) target = $region9
    $region8: #{tpu_custom_call.1} parent=1 // pred_region
      _
    $region9: #{tpu_custom_call.1} parent=1 // pred_fallthru
      _
    // Predicated region
    $region10: #{tpu_custom_call.1} parent=1 // pred_check
      _
    $region11: #{tpu_custom_call.1} parent=1 // pred_check_branch
      %36 = sbr.rel (0) target = $region13
    $region12: #{tpu_custom_call.1} parent=1 // pred_region
      _
    $region13: #{tpu_custom_call.1} parent=1 // pred_fallthru
      _
    // Predicated region
    $region14: #{tpu_custom_call.1} parent=1 // pred_check
      _
    $region15: #{tpu_custom_call.1} parent=1 // pred_check_branch
      %38 = sbr.rel (0) target = $region17
    $region16: #{tpu_custom_call.1} parent=1 // pred_region
      %40 = vsyncadd [#allocation6], 0
      %s41 = sshll.u32 %s3, 4
      %s42 = int_to_ptr.hbm [resolvable:$true] %s41
      %s43 = sshll.u32 [#allocation5], 4
      %s44 = int_to_ptr.vmem [resolvable:$true] %s43
      %49 = dma.hbm_to_vmem [thread:$0]  %s42, 512, %s44, [#allocation6], 128, 128, 8
    $region17: #{tpu_custom_call.1} parent=1 // pred_fallthru
      _
    // Predicated region
    $region18: #{tpu_custom_call.1} parent=1 // pred_check
      _
    $region19: #{tpu_custom_call.1} parent=1 // pred_check_branch
      %51 = sbr.rel (0) target = $region21
    $region20: #{tpu_custom_call.1} parent=1 // pred_region
      _
    $region21: #{tpu_custom_call.1} parent=1 // pred_fallthru
      _
    // Predicated region
    $region22: #{tpu_custom_call.1} parent=1 // pred_check
      _
    $region23: #{tpu_custom_call.1} parent=1 // pred_check_branch
      %53 = sbr.rel (0) target = $region25
    $region24: #{tpu_custom_call.1} parent=1 // pred_region
      _
    $region25: #{tpu_custom_call.1} parent=1 // pred_fallthru
      _
    // Predicated region
    $region26: #{tpu_custom_call.1} parent=1 // pred_check
      _
    $region27: #{tpu_custom_call.1} parent=1 // pred_check_branch
      %55 = sbr.rel (0) target = $region29
    $region28: #{tpu_custom_call.1} parent=1 // pred_region
      _
    $region29: #{tpu_custom_call.1} parent=1 // pred_fallthru
      _
    // Predicated region
    $region30: #{tpu_custom_call.1} parent=1 // pred_check
      _
    $region31: #{tpu_custom_call.1} parent=1 // pred_check_branch
      %57 = sbr.rel (0) target = $region33
    $region32: #{tpu_custom_call.1} parent=1 // pred_region
      %59 = vsyncadd [#allocation6], 0
      %s60 = sshll.u32 %s7, 4
      %s61 = int_to_ptr.hbm [resolvable:$true] %s60
      %s62 = sshll.u32 [#allocation7], 4
      %s63 = int_to_ptr.vmem [resolvable:$true] %s62
      %68 = dma.hbm_to_vmem [thread:$0]  %s61, 2048, %s63, [#allocation6], 64, 64, 4
    $region33: #{tpu_custom_call.1} parent=1 // pred_fallthru
      _
    // Predicated region
    $region34: #{tpu_custom_call.1} parent=1 // pred_check
      _
    $region35: #{tpu_custom_call.1} parent=1 // pred_check_branch
      %70 = sbr.rel (0) target = $region37
    $region36: #{tpu_custom_call.1} parent=1 // pred_region
      _
    $region37: #{tpu_custom_call.1} parent=1 // pred_fallthru
      _
    // Predicated region
    $region38: #{tpu_custom_call.1} parent=1 // pred_check
      _
    $region39: #{tpu_custom_call.1} parent=1 // pred_check_branch
      %72 = sbr.rel (0) target = $region41
    $region40: #{tpu_custom_call.1} parent=1 // pred_region
      %74 = vsyncadd [#allocation9], 0
      %s75 = sshll.u32 %s9, 4
      %s76 = int_to_ptr.hbm [resolvable:$true] %s75
      %s77 = sshll.u32 [#allocation8], 4
      %s78 = int_to_ptr.vmem [resolvable:$true] %s77
      %83 = dma.hbm_to_vmem [thread:$0]  %s76, 1024, %s78, [#allocation9], 64, 64, 4
    $region41: #{tpu_custom_call.1} parent=1 // pred_fallthru
      _
    // Predicated region
    $region42: #{tpu_custom_call.1} parent=1 // pred_check
      _
    $region43: #{tpu_custom_call.1} parent=1 // pred_check_branch
      %85 = sbr.rel (0) target = $region45
    $region44: #{tpu_custom_call.1} parent=1 // pred_region
      _
    $region45: #{tpu_custom_call.1} parent=1 // pred_fallthru
      _
    // Predicated region
    $region46: #{tpu_custom_call.1} parent=1 // pred_check
      _
    $region47: #{tpu_custom_call.1} parent=1 // pred_check_branch
      %87 = sbr.rel (0) target = $region49
    $region48: #{tpu_custom_call.1} parent=1 // pred_region
      %89 = vsyncadd [#allocation9], 0
      %s90 = sshll.u32 %s11, 4
      %s91 = int_to_ptr.hbm [resolvable:$true] %s90
      %s92 = sshll.u32 [#allocation10], 4
      %s93 = int_to_ptr.vmem [resolvable:$true] %s92
      %98 = dma.hbm_to_vmem [thread:$0]  %s91, 1024, %s93, [#allocation9], 64, 64, 4
    $region49: #{tpu_custom_call.1} parent=1 // pred_fallthru
      _
    // Predicated region
    $region50: #{tpu_custom_call.1} parent=1 // pred_check
      _
    $region51: #{tpu_custom_call.1} parent=1 // pred_check_branch
      %100 = sbr.rel (0) target = $region53
    $region52: #{tpu_custom_call.1} parent=1 // pred_region
      _
    $region53: #{tpu_custom_call.1} parent=1 // pred_fallthru
      _
    // Predicated region
    $region54: #{tpu_custom_call.1} parent=1 // pred_check
      _
    $region55: #{tpu_custom_call.1} parent=1 // pred_check_branch
      %102 = sbr.rel (0) target = $region57
    $region56: #{tpu_custom_call.1} parent=1 // pred_region
      %104 = dma.done [#allocation3], 16
    $region57: #{tpu_custom_call.1} parent=1 // pred_fallthru
      _
    // Predicated region
    $region58: #{tpu_custom_call.1} parent=1 // pred_check
      _
    $region59: #{tpu_custom_call.1} parent=1 // pred_check_branch
      %106 = sbr.rel (0) target = $region61
    $region60: #{tpu_custom_call.1} parent=1 // pred_region
      %108 = dma.done [#allocation6], 512
    $region61: #{tpu_custom_call.1} parent=1 // pred_fallthru
      _
    // Predicated region
    $region62: #{tpu_custom_call.1} parent=1 // pred_check
      _
    $region63: #{tpu_custom_call.1} parent=1 // pred_check_branch
      %110 = sbr.rel (0) target = $region65
    $region64: #{tpu_custom_call.1} parent=1 // pred_region
      %112 = dma.done [#allocation6], 2048
    $region65: #{tpu_custom_call.1} parent=1 // pred_fallthru
      _
    // Predicated region
    $region66: #{tpu_custom_call.1} parent=1 // pred_check
      _
    $region67: #{tpu_custom_call.1} parent=1 // pred_check_branch
      %114 = sbr.rel (0) target = $region69
    $region68: #{tpu_custom_call.1} parent=1 // pred_region
      %116 = dma.done [#allocation9], 1024
    $region69: #{tpu_custom_call.1} parent=1 // pred_fallthru
      _
    // Predicated region
    $region70: #{tpu_custom_call.1} parent=1 // pred_check
      _
    $region71: #{tpu_custom_call.1} parent=1 // pred_check_branch
      %118 = sbr.rel (0) target = $region73
    $region72: #{tpu_custom_call.1} parent=1 // pred_region
      %120 = dma.done [#allocation9], 1024
    $region73: #{tpu_custom_call.1} parent=1 // pred_fallthru
      _
    %v122 = vld [vmem:[#allocation2] sm:$0x1]
    %v123 = vld [vmem:[%s1] sm:$0x3]
    %v124 = vld [vmem:[%s2] sm:$0x3]
    %v125 = vld [vmem:[#allocation5] sm:$0xff]
    %v126 = vld [vmem:[#allocation5 + $0x8] sm:$0xff]
    %v127 = vld [vmem:[#allocation5 + $0x10] sm:$0xff]
    %v128 = vld [vmem:[#allocation5 + $0x18] sm:$0xff]
    %v129 = vld [vmem:[%s4] sm:$0x3]
    %131 = vset.pattern.permute.xlu0 0
    %132 = vperm.xlu0 %131, %v123
    %v133 = vpop.permute.xlu0 %132
    %v136 = vperm.slane %v129, 0
    %v137 = vperm.slane %v129, 1
    %v140 = vmul.f32 %v133, %v136
    %v141 = vmul.f32 %v133, %v137
    %v146 = vunpack.c.l.b16 %v125
    %v147 = vunpack.c.h.b16 %v125
    %v148 = vunpack.c.l.b16 %v126
    %v149 = vunpack.c.h.b16 %v126
    %v150 = vunpack.c.l.b16 %v127
    %v151 = vunpack.c.h.b16 %v127
    %v152 = vunpack.c.l.b16 %v128
    %v153 = vunpack.c.h.b16 %v128
    %v154 = vpack.c.b16 %v148, %v146
    %v155 = vpack.c.b16 %v149, %v147
    %v156 = vpack.c.b16 %v152, %v150
    %v157 = vpack.c.b16 %v153, %v151
    %vm162 = vcmask 261120
    %v164 = vsel %vm162, %v122, 0
    %166 = vmatpush.bf16.msra.mxu0 0
    %167 = vmatpush.bf16.msra.mxu0 0
    %168 = vmatpush.bf16.msra.mxu0 0
    %169 = vmatpush.bf16.msra.mxu0 0
    %170 = vmatpush.bf16.msra.mxu0 0
    %171 = vmatpush.bf16.msra.mxu0 0
    %172 = vmatpush.bf16.msra.mxu0 %v156
    %173 = vmatpush.bf16.msra.mxu0 %v154
    %174 = vmatmul.bf16.gmra.mxu0 %v164
    %v175 = vpop.f32.mrf.mxu0
    %v176 = vadd.f32 %v140, %v175
    %v177 = vpop.f32.mrf.mxu0
    %178 = vdwg.mxu0
    %179 = vmatpush.bf16.msra.mxu0 0
    %180 = vmatpush.bf16.msra.mxu0 0
    %181 = vmatpush.bf16.msra.mxu0 0
    %182 = vmatpush.bf16.msra.mxu0 0
    %183 = vmatpush.bf16.msra.mxu0 0
    %184 = vmatpush.bf16.msra.mxu0 0
    %185 = vmatpush.bf16.msra.mxu0 %v157
    %186 = vmatpush.bf16.msra.mxu0 %v155
    %187 = vmatmul.bf16.gmra.mxu0 %v164
    %v188 = vpop.f32.mrf.mxu0
    %v189 = vadd.f32 %v141, %v188
    %v190 = vpop.f32.mrf.mxu0
    %191 = vdwg.mxu0
    %v192 = vld [vmem:[%s5] sm:$0x3]
    %194 = vset.pattern.permute.xlu0 0
    %195 = vperm.xlu0 %194, %v124
    %v196 = vpop.permute.xlu0 %195
    %v199 = vperm.slane %v192, 0
    %v200 = vperm.slane %v192, 1
    %v203 = vmul.f32 %v196, %v199
    %v204 = vmul.f32 %v196, %v200
    %v205 = vadd.f32 %v176, %v203
    %v206 = vadd.f32 %v189, %v204
    %v207 = vld [vmem:[%s6] sm:$0x3]
    %v209 = vperm.slane %v207, 0
    %v210 = vperm.slane %v207, 1
    %v213 = vadd.f32 %v205, %v209
    %v214 = vadd.f32 %v206, %v210
    %v215 = vmax.f32 %v213, 0.0
    %v216 = vmax.f32 %v214, 0.0
    %v217 = vpack.c.bf16 %v215, %v215
    %v218 = vpack.c.bf16 %v216, %v216
    %v219 = vld [vmem:[#allocation7] sm:$0xf]
    %v220 = vld [vmem:[#allocation7 + $0x4] sm:$0xf]
    %v221 = vld [vmem:[#allocation7 + $0x8] sm:$0xf]
    %v222 = vld [vmem:[#allocation7 + $0xc] sm:$0xf]
    %v223 = vld [vmem:[#allocation7 + $0x10] sm:$0xf]
    %v224 = vld [vmem:[#allocation7 + $0x14] sm:$0xf]
    %v225 = vld [vmem:[#allocation7 + $0x18] sm:$0xf]
    %v226 = vld [vmem:[#allocation7 + $0x1c] sm:$0xf]
    %v227 = vld [vmem:[#allocation7 + $0x20] sm:$0xf]
    %v228 = vld [vmem:[#allocation7 + $0x24] sm:$0xf]
    %v229 = vld [vmem:[#allocation7 + $0x28] sm:$0xf]
    %v230 = vld [vmem:[#allocation7 + $0x2c] sm:$0xf]
    %v231 = vld [vmem:[#allocation7 + $0x30] sm:$0xf]
    %v232 = vld [vmem:[#allocation7 + $0x34] sm:$0xf]
    %v233 = vld [vmem:[#allocation7 + $0x38] sm:$0xf]
    %v234 = vld [vmem:[#allocation7 + $0x3c] sm:$0xf]
    %v235 = vld [vmem:[#allocation7 + $0x40] sm:$0xf]
    %v236 = vld [vmem:[#allocation7 + $0x44] sm:$0xf]
    %v237 = vld [vmem:[#allocation7 + $0x48] sm:$0xf]
    %v238 = vld [vmem:[#allocation7 + $0x4c] sm:$0xf]
    %v239 = vld [vmem:[#allocation7 + $0x50] sm:$0xf]
    %v240 = vld [vmem:[#allocation7 + $0x54] sm:$0xf]
    %v241 = vld [vmem:[#allocation7 + $0x58] sm:$0xf]
    %v242 = vld [vmem:[#allocation7 + $0x5c] sm:$0xf]
    %v243 = vld [vmem:[#allocation7 + $0x60] sm:$0xf]
    %v244 = vld [vmem:[#allocation7 + $0x64] sm:$0xf]
    %v245 = vld [vmem:[#allocation7 + $0x68] sm:$0xf]
    %v246 = vld [vmem:[#allocation7 + $0x6c] sm:$0xf]
    %v247 = vld [vmem:[#allocation7 + $0x70] sm:$0xf]
    %v248 = vld [vmem:[#allocation7 + $0x74] sm:$0xf]
    %v249 = vld [vmem:[#allocation7 + $0x78] sm:$0xf]
    %v250 = vld [vmem:[#allocation7 + $0x7c] sm:$0xf]
    %v251 = vld [vmem:[%s8] sm:$0x1]
    %v253 = vperm.slane %v251, 0
    %v287 = vunpack.c.l.b16 %v219
    %v288 = vunpack.c.l.b16 %v220
    %v289 = vunpack.c.l.b16 %v221
    %v290 = vunpack.c.l.b16 %v222
    %v291 = vunpack.c.l.b16 %v223
    %v292 = vunpack.c.l.b16 %v224
    %v293 = vunpack.c.l.b16 %v225
    %v294 = vunpack.c.l.b16 %v226
    %v295 = vunpack.c.l.b16 %v227
    %v296 = vunpack.c.l.b16 %v228
    %v297 = vunpack.c.l.b16 %v229
    %v298 = vunpack.c.l.b16 %v230
    %v299 = vunpack.c.l.b16 %v231
    %v300 = vunpack.c.l.b16 %v232
    %v301 = vunpack.c.l.b16 %v233
    %v302 = vunpack.c.l.b16 %v234
    %v303 = vunpack.c.l.b16 %v235
    %v304 = vunpack.c.l.b16 %v236
    %v305 = vunpack.c.l.b16 %v237
    %v306 = vunpack.c.l.b16 %v238
    %v307 = vunpack.c.l.b16 %v239
    %v308 = vunpack.c.l.b16 %v240
    %v309 = vunpack.c.l.b16 %v241
    %v310 = vunpack.c.l.b16 %v242
    %v311 = vunpack.c.l.b16 %v243
    %v312 = vunpack.c.l.b16 %v244
    %v313 = vunpack.c.l.b16 %v245
    %v314 = vunpack.c.l.b16 %v246
    %v315 = vunpack.c.l.b16 %v247
    %v316 = vunpack.c.l.b16 %v248
    %v317 = vunpack.c.l.b16 %v249
    %v318 = vunpack.c.l.b16 %v250
    %v319 = vpack.c.b16 %v288, %v287
    %v320 = vpack.c.b16 %v290, %v289
    %v321 = vpack.c.b16 %v292, %v291
    %v322 = vpack.c.b16 %v294, %v293
    %v323 = vpack.c.b16 %v296, %v295
    %v324 = vpack.c.b16 %v298, %v297
    %v325 = vpack.c.b16 %v300, %v299
    %v326 = vpack.c.b16 %v302, %v301
    %v327 = vpack.c.b16 %v304, %v303
    %v328 = vpack.c.b16 %v306, %v305
    %v329 = vpack.c.b16 %v308, %v307
    %v330 = vpack.c.b16 %v310, %v309
    %v331 = vpack.c.b16 %v312, %v311
    %v332 = vpack.c.b16 %v314, %v313
    %v333 = vpack.c.b16 %v316, %v315
    %v334 = vpack.c.b16 %v318, %v317
    %351 = vmatpush.bf16.msra.mxu0 %v326
    %352 = vmatpush.bf16.msra.mxu0 %v325
    %353 = vmatpush.bf16.msra.mxu0 %v324
    %354 = vmatpush.bf16.msra.mxu0 %v323
    %355 = vmatpush.bf16.msra.mxu0 %v322
    %356 = vmatpush.bf16.msra.mxu0 %v321
    %357 = vmatpush.bf16.msra.mxu0 %v320
    %358 = vmatpush.bf16.msra.mxu0 %v319
    %359 = vmatmul.bf16.gmra.mxu0 %v217
    %v360 = vpop.f32.mrf.mxu0
    %v361 = vadd.f32 %v253, %v360
    %v362 = vpop.f32.mrf.mxu0
    %363 = vdwg.mxu0
    %364 = vmatpush.bf16.msra.mxu0 %v334
    %365 = vmatpush.bf16.msra.mxu0 %v333
    %366 = vmatpush.bf16.msra.mxu0 %v332
    %367 = vmatpush.bf16.msra.mxu0 %v331
    %368 = vmatpush.bf16.msra.mxu0 %v330
    %369 = vmatpush.bf16.msra.mxu0 %v329
    %370 = vmatpush.bf16.msra.mxu0 %v328
    %371 = vmatpush.bf16.msra.mxu0 %v327
    %372 = vmatmul.bf16.gmra.mxu0 %v218
    %v373 = vpop.f32.mrf.mxu0
    %v374 = vadd.f32 %v361, %v373
    %v375 = vpop.f32.mrf.mxu0
    %376 = vdwg.mxu0
    %v377 = vmax.f32 %v374, 0.0
    %v378 = vpack.c.bf16 %v377, %v377
    %v379 = vld [vmem:[#allocation8] sm:$0xf]
    %v380 = vld [vmem:[#allocation8 + $0x4] sm:$0xf]
    %v381 = vld [vmem:[#allocation8 + $0x8] sm:$0xf]
    %v382 = vld [vmem:[#allocation8 + $0xc] sm:$0xf]
    %v383 = vld [vmem:[#allocation8 + $0x10] sm:$0xf]
    %v384 = vld [vmem:[#allocation8 + $0x14] sm:$0xf]
    %v385 = vld [vmem:[#allocation8 + $0x18] sm:$0xf]
    %v386 = vld [vmem:[#allocation8 + $0x1c] sm:$0xf]
    %v387 = vld [vmem:[#allocation8 + $0x20] sm:$0xf]
    %v388 = vld [vmem:[#allocation8 + $0x24] sm:$0xf]
    %v389 = vld [vmem:[#allocation8 + $0x28] sm:$0xf]
    %v390 = vld [vmem:[#allocation8 + $0x2c] sm:$0xf]
    %v391 = vld [vmem:[#allocation8 + $0x30] sm:$0xf]
    %v392 = vld [vmem:[#allocation8 + $0x34] sm:$0xf]
    %v393 = vld [vmem:[#allocation8 + $0x38] sm:$0xf]
    %v394 = vld [vmem:[#allocation8 + $0x3c] sm:$0xf]
    %v395 = vld [vmem:[%s10] sm:$0x1]
    %v397 = vperm.slane %v395, 0
    %v415 = vunpack.c.l.b16 %v379
    %v416 = vunpack.c.l.b16 %v380
    %v417 = vunpack.c.l.b16 %v381
    %v418 = vunpack.c.l.b16 %v382
    %v419 = vunpack.c.l.b16 %v383
    %v420 = vunpack.c.l.b16 %v384
    %v421 = vunpack.c.l.b16 %v385
    %v422 = vunpack.c.l.b16 %v386
    %v423 = vunpack.c.l.b16 %v387
    %v424 = vunpack.c.l.b16 %v388
    %v425 = vunpack.c.l.b16 %v389
    %v426 = vunpack.c.l.b16 %v390
    %v427 = vunpack.c.l.b16 %v391
    %v428 = vunpack.c.l.b16 %v392
    %v429 = vunpack.c.l.b16 %v393
    %v430 = vunpack.c.l.b16 %v394
    %v431 = vpack.c.b16 %v416, %v415
    %v432 = vpack.c.b16 %v418, %v417
    %v433 = vpack.c.b16 %v420, %v419
    %v434 = vpack.c.b16 %v422, %v421
    %v435 = vpack.c.b16 %v424, %v423
    %v436 = vpack.c.b16 %v426, %v425
    %v437 = vpack.c.b16 %v428, %v427
    %v438 = vpack.c.b16 %v430, %v429
    %447 = vmatpush.bf16.msra.mxu0 %v438
    %448 = vmatpush.bf16.msra.mxu0 %v437
    %449 = vmatpush.bf16.msra.mxu0 %v436
    %450 = vmatpush.bf16.msra.mxu0 %v435
    %451 = vmatpush.bf16.msra.mxu0 %v434
    %452 = vmatpush.bf16.msra.mxu0 %v433
    %453 = vmatpush.bf16.msra.mxu0 %v432
    %454 = vmatpush.bf16.msra.mxu0 %v431
    %455 = vmatmul.bf16.gmra.mxu0 %v378
    %v456 = vpop.f32.mrf.mxu0
    %v457 = vadd.f32 %v397, %v456
    %v458 = vpop.f32.mrf.mxu0
    %459 = vdwg.mxu0
    %v460 = vmax.f32 %v457, 0.0
    %v461 = vpack.c.bf16 %v460, %v460
    %v462 = vld [vmem:[#allocation10] sm:$0xf]
    %v463 = vld [vmem:[#allocation10 + $0x4] sm:$0xf]
    %v464 = vld [vmem:[#allocation10 + $0x8] sm:$0xf]
    %v465 = vld [vmem:[#allocation10 + $0xc] sm:$0xf]
    %v466 = vld [vmem:[#allocation10 + $0x10] sm:$0xf]
    %v467 = vld [vmem:[#allocation10 + $0x14] sm:$0xf]
    %v468 = vld [vmem:[#allocation10 + $0x18] sm:$0xf]
    %v469 = vld [vmem:[#allocation10 + $0x1c] sm:$0xf]
    %v470 = vld [vmem:[#allocation10 + $0x20] sm:$0xf]
    %v471 = vld [vmem:[#allocation10 + $0x24] sm:$0xf]
    %v472 = vld [vmem:[#allocation10 + $0x28] sm:$0xf]
    %v473 = vld [vmem:[#allocation10 + $0x2c] sm:$0xf]
    %v474 = vld [vmem:[#allocation10 + $0x30] sm:$0xf]
    %v475 = vld [vmem:[#allocation10 + $0x34] sm:$0xf]
    %v476 = vld [vmem:[#allocation10 + $0x38] sm:$0xf]
    %v477 = vld [vmem:[#allocation10 + $0x3c] sm:$0xf]
    %v478 = vld [vmem:[%s12] sm:$0x1]
    %v480 = vperm.slane %v478, 0
    %v498 = vunpack.c.l.b16 %v462
    %v499 = vunpack.c.l.b16 %v463
    %v500 = vunpack.c.l.b16 %v464
    %v501 = vunpack.c.l.b16 %v465
    %v502 = vunpack.c.l.b16 %v466
    %v503 = vunpack.c.l.b16 %v467
    %v504 = vunpack.c.l.b16 %v468
    %v505 = vunpack.c.l.b16 %v469
    %v506 = vunpack.c.l.b16 %v470
    %v507 = vunpack.c.l.b16 %v471
    %v508 = vunpack.c.l.b16 %v472
    %v509 = vunpack.c.l.b16 %v473
    %v510 = vunpack.c.l.b16 %v474
    %v511 = vunpack.c.l.b16 %v475
    %v512 = vunpack.c.l.b16 %v476
    %v513 = vunpack.c.l.b16 %v477
    %v514 = vpack.c.b16 %v499, %v498
    %v515 = vpack.c.b16 %v501, %v500
    %v516 = vpack.c.b16 %v503, %v502
    %v517 = vpack.c.b16 %v505, %v504
    %v518 = vpack.c.b16 %v507, %v506
    %v519 = vpack.c.b16 %v509, %v508
    %v520 = vpack.c.b16 %v511, %v510
    %v521 = vpack.c.b16 %v513, %v512
    %530 = vmatpush.bf16.msra.mxu0 %v521
    %531 = vmatpush.bf16.msra.mxu0 %v520
    %532 = vmatpush.bf16.msra.mxu0 %v519
    %533 = vmatpush.bf16.msra.mxu0 %v518
    %534 = vmatpush.bf16.msra.mxu0 %v517
    %535 = vmatpush.bf16.msra.mxu0 %v516
    %536 = vmatpush.bf16.msra.mxu0 %v515
    %537 = vmatpush.bf16.msra.mxu0 %v514
    %538 = vmatmul.bf16.gmra.mxu0 %v461
    %v539 = vpop.f32.mrf.mxu0
    %v540 = vadd.f32 %v480, %v539
    %v541 = vpop.f32.mrf.mxu0
    %542 = vdwg.mxu0
    %vm543 = vcmask 1041408
    %v544 = vsel %vm543, %v540, -inf
    %545 = vmax.xlane.f32.xlu0 %v544
    %v546 = vpop.xlane.xlu0 %545
    %v547 = vsub.f32 %v540, %v546
    %v548 = vmul.f32 %v547, 1.442695
    %v549 = vpow.pop %v548
    %v550 = vsel %vm543, %v549, 0.0
    %551 = vadd.xlane.f32.xlu0 %v550
    %v552 = vpop.xlane.xlu0 %551
    %v553 = vrcp.pop %v552
    %v554 = vmul.f32 %v552, %v553
    %v555 = vsub.f32 1.0, %v554
    %v556 = vmul.f32 %v553, %v555
    %v557 = vadd.f32 %v553, %v556
    %vm558 = vweird.f32 %v552
    %vm559 = vweird.f32 %v553
    %vm560 = vmor %vm558, %vm559
    %v561 = vsel %vm560, %v553, %v557
    %v562 = vand.u32 2147483647, %v552
    %vm563 = vcmp.eq.f32.partialorder %v562, 8.507059e+37
    %v564 = vand.u32 %v552, 2147483648
    %v565 = vor.u32 1.1754944e-38, %v564
    %v566 = vsel %vm563, %v565, %v561
    %v567 = vmul.f32 %v549, %v566
    %vm568 = vcmask 58368
    %569 = vst.msk [vmem:[#allocation11] sm:$0x3] %vm568, %v567
    // Predicated region
    $region74: #{tpu_custom_call.1} parent=1 // pred_check
      _
    $region75: #{tpu_custom_call.1} parent=1 // pred_check_branch
      %571 = sbr.rel (0) target = $region77
    $region76: #{tpu_custom_call.1} parent=1 // pred_region
      %573 = vsyncadd [#allocation4], 0
      %s575 = sshll.u32 [#allocation11], 4
      %s576 = int_to_ptr.vmem [resolvable:$true] %s575
      %s577 = sshll.u32 %s13, 4
      %s578 = int_to_ptr.hbm [resolvable:$true] %s577
      %580 = dma.vmem_to_hbm [thread:$0]  %s576, 32, %s578, [#allocation4]
    $region77: #{tpu_custom_call.1} parent=1 // pred_fallthru
      _
    // Predicated region
    $region78: #{tpu_custom_call.1} parent=1 // pred_check
      _
    $region79: #{tpu_custom_call.1} parent=1 // pred_check_branch
      %582 = sbr.rel (0) target = $region81
    $region80: #{tpu_custom_call.1} parent=1 // pred_region
      %584 = dma.done [#allocation4], 32
    $region81: #{tpu_custom_call.1} parent=1 // pred_fallthru
      _
    %585 = vsyncpa [#allocation3], 1
    %586 = vsyncpa [#allocation6], 1
    %587 = vsyncpa [#allocation9], 1
    %588 = vsyncpa [#allocation4], 1

</llo_original>
